<compile_context>
chip_gen: v5e
topology: v5e:2x2
jax: 0.10.0
libtpu: 0.0.40
codegen_flags: <defaults>
</compile_context>

<pallas_src>
import functools

import jax
import jax.numpy as jnp
from jax import lax
from jax.experimental import pallas as pl
from jax.experimental.pallas import tpu as pltpu

_LANE = 128
_MAX_BLOCK_ROWS = 4096          # <= 4096 * 128 spatial positions per grid step
_SMOOTH = 1e-5


def _vmem_capacity_bytes():
    """Per-core VMEM capacity; conservative fallback if the query fails."""
    try:
        info = pltpu.get_tpu_info()
        cap = getattr(info, "vmem_capacity_bytes", None)
        if cap:
            return int(cap)
    except Exception:
        pass
    return 64 * 1024 * 1024     # v7x per-TensorCore VMEM (smallest generation)


def _dice_partials_kernel(score_ref, tgt_ref, out_ref, acc_ref, *,
                          n_classes, spatial, block_rows,
                          apply_softmax, needs_mask):
    """Accumulates per-class (intersect, y_sum, z_sum) partial sums.

    Grid = (N, J): n = batch element ("parallel"), j = spatial chunk of
    `block_rows` 128-lane rows ("arbitrary" reduction axis).
    """
    j = pl.program_id(1)
    last_j = pl.num_programs(1) - 1

    @pl.when(j == 0)
    def _():
        acc_ref[...] = jnp.zeros_like(acc_ref)

    s = score_ref[0].astype(jnp.float32)        # (C, TBR, 128)
    t = tgt_ref[0].astype(jnp.int32)            # (1, TBR, 128)

    if apply_softmax:
        # Softmax over the class axis -- fully contained in this block.
        m = jnp.max(s, axis=0, keepdims=True)
        e = jnp.exp(s - m)                      # EUP
        s = e / jnp.sum(e, axis=0, keepdims=True)

    class_ids = lax.broadcasted_iota(jnp.int32, (n_classes, 1, 1), 0)

    def _accumulate(valid):
        oh = t == class_ids                                   # (C, TBR, 128)
        if valid is not None:
            oh = jnp.logical_and(oh, valid)
            s_v = jnp.where(valid, s, 0.0)
        else:
            s_v = s
        ohf = oh.astype(jnp.float32)
        # Sublane (row) reduction only; the lane axis stays resident in the
        # scratch accumulator and is reduced once per batch element.
        acc_ref[0] += jnp.sum(s_v * ohf, axis=1)              # intersect (C,128)
        acc_ref[1] += jnp.sum(ohf, axis=1)                    # y_sum     (C,128)
        acc_ref[2] += jnp.sum(s_v * s_v, axis=1)              # z_sum     (C,128)

    if needs_mask:
        is_last = j == last_j

        @pl.when(is_last)
        def _():
            # Ragged tail (host pad region and/or OOB rows of the last block).
            row = lax.broadcasted_iota(jnp.int32, (1, block_rows, _LANE), 1)
            lane = lax.broadcasted_iota(jnp.int32, (1, block_rows, _LANE), 2)
            pos = (j * block_rows + row) * _LANE + lane
            _accumulate(pos < spatial)

        @pl.when(jnp.logical_not(is_last))
        def _():
            _accumulate(None)
    else:
        _accumulate(None)

    @pl.when(j == last_j)
    def _():
        # One cross-lane reduce + one tiny store per batch element.
        out_ref[0] = jnp.sum(acc_ref[...], axis=2)            # (3, C)


def dice_loss(inputs, target, n_classes, weight=None, softmax=False):
    """Pallas implementation of DiceLoss.forward.

    inputs: (N, C, H, W) scores (any float dtype), target: (N, H, W) labels.
    Returns scalar float32 loss.
    """
    N, C, H, W = inputs.shape
    assert C == n_classes, f"predict C={C} & n_classes={n_classes} do not match"
    S = H * W
    ROWS = pl.cdiv(S, _LANE)
    S_pad = ROWS * _LANE

    # Free views; score stays in its native dtype (no f32 copy in HBM).
    score = inputs.reshape(N, C, S)
    if jnp.issubdtype(target.dtype, jnp.integer):
        tgt = target.reshape(N, 1, S)           # keep narrow int dtypes narrow
    else:
        tgt = target.reshape(N, 1, S).astype(jnp.int32)

    if S_pad != S:
        # TODO(synk): rare fallback copy when H*W is not a multiple of 128;
        # the padded tail is masked out inside the kernel.
        score = jnp.pad(score, ((0, 0), (0, 0), (0, S_pad - S)))
        tgt = jnp.pad(tgt, ((0, 0), (0, 0), (0, S_pad - S)))

    score = score.reshape(N, C, ROWS, _LANE)
    tgt = tgt.reshape(N, 1, ROWS, _LANE)

    score_bytes = jnp.dtype(score.dtype).itemsize
    tgt_bytes = jnp.dtype(tgt.dtype).itemsize
    row_bytes = _LANE * (C * score_bytes + tgt_bytes)   # real bytes per 128-row

    vmem_cap = _vmem_capacity_bytes()
    # Budget for the double-buffered input blocks; leave headroom for scratch,
    # the resident output block and compiler-internal buffers.
    block_budget = min(vmem_cap // 2, 64 * 1024 * 1024)
    tbr = min(block_budget // (2 * row_bytes), _MAX_BLOCK_ROWS)
    row_align = 8 if (score_bytes >= 4 and tgt_bytes >= 4) else 32
    if tbr >= ROWS:
        TBR = ROWS                              # full extent: any row count ok
    else:
        TBR = max(row_align, (tbr // row_align) * row_align)
    J = pl.cdiv(ROWS, TBR)
    needs_mask = (S % (TBR * _LANE)) != 0

    kernel = functools.partial(
        _dice_partials_kernel, n_classes=C, spatial=S, block_rows=TBR,
        apply_softmax=bool(softmax), needs_mask=bool(needs_mask))

    vmem_limit = max(32 * 1024 * 1024,
                     min((vmem_cap * 3) // 4, 100 * 1024 * 1024))

    # partials[n, :, c] = (intersect, y_sum, z_sum) for batch element n.
    partials = pl.pallas_call(
        kernel,
        out_shape=jax.ShapeDtypeStruct((N, 3, C), jnp.float32),
        grid=(N, J),
        in_specs=[
            pl.BlockSpec((1, C, TBR, _LANE), lambda n, j: (n, 0, j, 0)),
            pl.BlockSpec((1, 1, TBR, _LANE), lambda n, j: (n, 0, j, 0)),
        ],
        out_specs=pl.BlockSpec((1, 3, C), lambda n, j: (n, 0, 0)),
        scratch_shapes=[pltpu.VMEM((3, C, _LANE), jnp.float32)],
        compiler_params=pltpu.CompilerParams(
            dimension_semantics=("parallel", "arbitrary"),
            vmem_limit_bytes=vmem_limit,
        ),
    )(score, tgt)
    # TODO(synk): on v7x with N == 1 a 2-way parallel split of the spatial axis
    # (grid=(N, 2, ...)) would occupy both TensorCores; omitted here to keep
    # the accumulator / tail-mask logic simple.

    # Tiny epilogue in plain JAX: combine over batch, per-class dice,
    # weighting, mean over classes.
    totals = jnp.sum(partials, axis=0)          # (3, C)
    intersect, y_sum, z_sum = totals[0], totals[1], totals[2]

    if weight is None:
        weight = [1.0] * n_classes
    w = jnp.asarray(weight, dtype=jnp.float32)

    dice = 1.0 - (2.0 * intersect + _SMOOTH) / (z_sum + y_sum + _SMOOTH)
    return jnp.sum(dice * w) / jnp.float32(n_classes)


def _reference_dice_loss(inputs, target, n_classes, weight=None, softmax=False):
    if softmax:
        inputs = jax.nn.softmax(inputs, axis=1)
    onehot = (target[:, None, :, :]
              == jnp.arange(n_classes)[None, :, None, None]).astype(jnp.float32)
    if weight is None:
        weight = [1.0] * n_classes
    w = jnp.asarray(weight, dtype=jnp.float32)
    smooth = 1e-5
    loss = jnp.float32(0.0)
    for i in range(n_classes):
        s = inputs[:, i].astype(jnp.float32)
        t = onehot[:, i]
        intersect = jnp.sum(s * t)
        y_sum = jnp.sum(t * t)
        z_sum = jnp.sum(s * s)
        dice = 1.0 - (2.0 * intersect + smooth) / (z_sum + y_sum + smooth)
        loss = loss + dice * w[i]
    return loss / n_classes


if __name__ == "__main__":
    n_classes = 4
    N, H, W = 2, 16, 16

    key = jax.random.PRNGKey(0)
    k_in, k_tgt = jax.random.split(key)
    inputs = jax.random.uniform(k_in, (N, n_classes, H, W), dtype=jnp.float32)
    target = jax.random.randint(k_tgt, (N, H, W), 0, n_classes, dtype=jnp.int32)

    # Plain path.
    loss = dice_loss(inputs, target, n_classes, weight=None, softmax=False)
    loss = jax.block_until_ready(loss)
    ref = _reference_dice_loss(inputs, target, n_classes, weight=None,
                               softmax=False)
    assert jnp.allclose(loss, ref, rtol=1e-5, atol=1e-6), (loss, ref)

    # Fused-softmax path.
    loss_sm = dice_loss(inputs, target, n_classes, weight=None, softmax=True)
    loss_sm = jax.block_until_ready(loss_sm)
    ref_sm = _reference_dice_loss(inputs, target, n_classes, weight=None,
                                  softmax=True)
    assert jnp.allclose(loss_sm, ref_sm, rtol=1e-5, atol=1e-6), (loss_sm, ref_sm)

    print("KERNEL_OK")
</pallas_src>

<mosaic_0001>
module attributes {stable_mosaic.version = 11 : i64} {
  func.func @_dice_partials_kernel(%arg0: i32, %arg1: i32, %arg2: memref<1x4x2x128xf32, #tpu.memory_space<vmem>>, %arg3: memref<1x1x2x128xi32, #tpu.memory_space<vmem>>, %arg4: memref<1x3x4xf32, #tpu.memory_space<vmem>>, %arg5: memref<3x4x128xf32, #tpu.memory_space<vmem>>) attributes {dimension_semantics = [#tpu.dimension_semantics<parallel>, #tpu.dimension_semantics<arbitrary>], iteration_bounds = array<i64: 2, 1>, scalar_prefetch = 0 : i64, scratch_operands = 1 : i64, tpu.core_type = #tpu.core_type<tc>, window_params = [{transform_indices = @transform_0, window_bounds = array<i64: 1, 4, 2, 128>}, {transform_indices = @transform_1, window_bounds = array<i64: 1, 1, 2, 128>}, {transform_indices = @transform_2, window_bounds = array<i64: 1, 3, 4>}]} {
    %c0_i32 = arith.constant 0 : i32
    %0 = arith.cmpi eq, %arg1, %c0_i32 : i32
    %1 = arith.extui %0 : i1 to i32
    %c0_i32_0 = arith.constant 0 : i32
    %2 = arith.cmpi ne, %1, %c0_i32_0 : i32
    scf.if %2 {
      %cst_28 = arith.constant 0.000000e+00 : f32
      %39 = vector.broadcast %cst_28 : f32 to vector<3x4x128xf32>
      %c0_29 = arith.constant 0 : index
      %c0_30 = arith.constant 0 : index
      %c0_31 = arith.constant 0 : index
      %40 = vector.load %arg5[%c0_29, %c0_30, %c0_31] : memref<3x4x128xf32, #tpu.memory_space<vmem>>, vector<3x4x128xf32>
      tpu.vector_store %arg5[%c0_29, %c0_30, %c0_31], %39 {strides = array<i32>} : memref<3x4x128xf32, #tpu.memory_space<vmem>>, vector<3x4x128xf32>,
    } else {
    }
    %c0 = arith.constant 0 : index
    %c0_1 = arith.constant 0 : index
    %c0_2 = arith.constant 0 : index
    %c0_3 = arith.constant 0 : index
    %3 = vector.load %arg2[%c0, %c0_1, %c0_2, %c0_3] : memref<1x4x2x128xf32, #tpu.memory_space<vmem>>, vector<1x4x2x128xf32>
    %4 = vector.shape_cast %3 : vector<1x4x2x128xf32> to vector<4x2x128xf32>
    %c0_4 = arith.constant 0 : index
    %c0_5 = arith.constant 0 : index
    %c0_6 = arith.constant 0 : index
    %c0_7 = arith.constant 0 : index
    %5 = vector.load %arg3[%c0_4, %c0_5, %c0_6, %c0_7] : memref<1x1x2x128xi32, #tpu.memory_space<vmem>>, vector<1x1x2x128xi32>
    %6 = vector.shape_cast %5 : vector<1x1x2x128xi32> to vector<1x2x128xi32>
    %7 = tpu.iota {dimensions = array<i32: 0>} : vector<4x1x1xi32>
    %8 = vector.broadcast %6 : vector<1x2x128xi32> to vector<4x2x128xi32>
    %9 = vector.broadcast %7 : vector<4x1x1xi32> to vector<4x2x128xi32>
    %10 = arith.cmpi eq, %8, %9 : vector<4x2x128xi32>
    %11 = arith.extui %10 : vector<4x2x128xi1> to vector<4x2x128xi32>
    %12 = arith.sitofp %11 : vector<4x2x128xi32> to vector<4x2x128xf32>
    %c0_8 = arith.constant 0 : index
    %c0_9 = arith.constant 0 : index
    %c0_10 = arith.constant 0 : index
    %13 = vector.load %arg5[%c0_8, %c0_9, %c0_10] : memref<3x4x128xf32, #tpu.memory_space<vmem>>, vector<1x4x128xf32>
    %14 = vector.shape_cast %13 : vector<1x4x128xf32> to vector<4x128xf32>
    %15 = arith.mulf %4, %12 : vector<4x2x128xf32>
    %cst = arith.constant dense<0.000000e+00> : vector<4x128xf32>
    %16 = vector.multi_reduction <add>, %15, %cst [1] : vector<4x2x128xf32> to vector<4x128xf32>
    %17 = arith.addf %14, %16 : vector<4x128xf32>
    %c0_11 = arith.constant 0 : index
    %c0_12 = arith.constant 0 : index
    %c0_13 = arith.constant 0 : index
    %18 = vector.load %arg5[%c0_11, %c0_12, %c0_13] : memref<3x4x128xf32, #tpu.memory_space<vmem>>, vector<1x4x128xf32>
    %19 = vector.shape_cast %18 : vector<1x4x128xf32> to vector<4x128xf32>
    %20 = vector.shape_cast %17 : vector<4x128xf32> to vector<1x4x128xf32>
    tpu.vector_store %arg5[%c0_11, %c0_12, %c0_13], %20 {strides = array<i32>} : memref<3x4x128xf32, #tpu.memory_space<vmem>>, vector<1x4x128xf32>,
    %c1 = arith.constant 1 : index
    %c0_14 = arith.constant 0 : index
    %c0_15 = arith.constant 0 : index
    %21 = vector.load %arg5[%c1, %c0_14, %c0_15] : memref<3x4x128xf32, #tpu.memory_space<vmem>>, vector<1x4x128xf32>
    %22 = vector.shape_cast %21 : vector<1x4x128xf32> to vector<4x128xf32>
    %cst_16 = arith.constant dense<0.000000e+00> : vector<4x128xf32>
    %23 = vector.multi_reduction <add>, %12, %cst_16 [1] : vector<4x2x128xf32> to vector<4x128xf32>
    %24 = arith.addf %22, %23 : vector<4x128xf32>
    %c1_17 = arith.constant 1 : index
    %c0_18 = arith.constant 0 : index
    %c0_19 = arith.constant 0 : index
    %25 = vector.load %arg5[%c1_17, %c0_18, %c0_19] : memref<3x4x128xf32, #tpu.memory_space<vmem>>, vector<1x4x128xf32>
    %26 = vector.shape_cast %25 : vector<1x4x128xf32> to vector<4x128xf32>
    %27 = vector.shape_cast %24 : vector<4x128xf32> to vector<1x4x128xf32>
    tpu.vector_store %arg5[%c1_17, %c0_18, %c0_19], %27 {strides = array<i32>} : memref<3x4x128xf32, #tpu.memory_space<vmem>>, vector<1x4x128xf32>,
    %c2 = arith.constant 2 : index
    %c0_20 = arith.constant 0 : index
    %c0_21 = arith.constant 0 : index
    %28 = vector.load %arg5[%c2, %c0_20, %c0_21] : memref<3x4x128xf32, #tpu.memory_space<vmem>>, vector<1x4x128xf32>
    %29 = vector.shape_cast %28 : vector<1x4x128xf32> to vector<4x128xf32>
    %30 = arith.mulf %4, %4 : vector<4x2x128xf32>
    %cst_22 = arith.constant dense<0.000000e+00> : vector<4x128xf32>
    %31 = vector.multi_reduction <add>, %30, %cst_22 [1] : vector<4x2x128xf32> to vector<4x128xf32>
    %32 = arith.addf %29, %31 : vector<4x128xf32>
    %c2_23 = arith.constant 2 : index
    %c0_24 = arith.constant 0 : index
    %c0_25 = arith.constant 0 : index
    %33 = vector.load %arg5[%c2_23, %c0_24, %c0_25] : memref<3x4x128xf32, #tpu.memory_space<vmem>>, vector<1x4x128xf32>
    %34 = vector.shape_cast %33 : vector<1x4x128xf32> to vector<4x128xf32>
    %35 = vector.shape_cast %32 : vector<4x128xf32> to vector<1x4x128xf32>
    tpu.vector_store %arg5[%c2_23, %c0_24, %c0_25], %35 {strides = array<i32>} : memref<3x4x128xf32, #tpu.memory_space<vmem>>, vector<1x4x128xf32>,
    %c0_i32_26 = arith.constant 0 : i32
    %36 = arith.cmpi eq, %arg1, %c0_i32_26 : i32
    %37 = arith.extui %36 : i1 to i32
    %c0_i32_27 = arith.constant 0 : i32
    %38 = arith.cmpi ne, %37, %c0_i32_27 : i32
    scf.if %38 {
      %c0_28 = arith.constant 0 : index
      %c0_29 = arith.constant 0 : index
      %c0_30 = arith.constant 0 : index
      %39 = vector.load %arg5[%c0_28, %c0_29, %c0_30] : memref<3x4x128xf32, #tpu.memory_space<vmem>>, vector<3x4x128xf32>
      %cst_31 = arith.constant dense<0.000000e+00> : vector<3x4xf32>
      %40 = vector.multi_reduction <add>, %39, %cst_31 [2] : vector<3x4x128xf32> to vector<3x4xf32>
      %c0_32 = arith.constant 0 : index
      %c0_33 = arith.constant 0 : index
      %c0_34 = arith.constant 0 : index
      %41 = vector.load %arg4[%c0_32, %c0_33, %c0_34] : memref<1x3x4xf32, #tpu.memory_space<vmem>>, vector<1x3x4xf32>
      %42 = vector.shape_cast %41 : vector<1x3x4xf32> to vector<3x4xf32>
      %43 = vector.shape_cast %40 : vector<3x4xf32> to vector<1x3x4xf32>
      tpu.vector_store %arg4[%c0_32, %c0_33, %c0_34], %43 {strides = array<i32>} : memref<1x3x4xf32, #tpu.memory_space<vmem>>, vector<1x3x4xf32>,
    } else {
    }
    return
  }
  func.func @transform_0(%arg0: i32, %arg1: i32) -> (i32, i32, i32, i32) {
    %c0_i32 = arith.constant 0 : i32
    %c0_i32_0 = arith.constant 0 : i32
    %c0_i32_1 = arith.constant 0 : i32
    return %arg0, %c0_i32, %arg1, %c0_i32_0 : i32, i32, i32, i32
  }
  func.func @transform_1(%arg0: i32, %arg1: i32) -> (i32, i32, i32, i32) {
    %c0_i32 = arith.constant 0 : i32
    %c0_i32_0 = arith.constant 0 : i32
    %c0_i32_1 = arith.constant 0 : i32
    return %arg0, %c0_i32, %arg1, %c0_i32_0 : i32, i32, i32, i32
  }
  func.func @transform_2(%arg0: i32, %arg1: i32) -> (i32, i32, i32) {
    %c0_i32 = arith.constant 0 : i32
    %c0_i32_0 = arith.constant 0 : i32
    %c0_i32_1 = arith.constant 0 : i32
    return %arg0, %c0_i32, %c0_i32_0 : i32, i32, i32
  }
}

</mosaic_0001>

<llo_original>
// kernel: tpu_custom_call.1
$region0: #{tpu_custom_call.1}
  #allocation0 [shape = 'u32[]', space=smem, size = 0x4, offset = 0x4, fixed_abs, tag = 'smem constant byte address 0x4 - core index']
  #allocation1 [shape = 'u32[72,128]{1,0:T(1,128)}', space=vmem, size = 0x9000, scoped, tag = 'internal scratch']
  #allocation2 [shape = 'f32[3,4,128]{2,1,0:T(4,128)}', space=vmem, size = 0x1800, scoped, tag = 'scratch operand']
  %s0 = inlined_call_operand.hbm [shape: f32[2,4,2,128], index: 0, kind: input, shape index: {}]
  %s1 = inlined_call_operand.hbm [shape: s32[2,1,2,128], index: 1, kind: input, shape index: {}]
  %s2 = inlined_call_operand.vmem [shape: f32[2,3,4], index: 2, kind: output, shape index: {}]
  %s3 = sld [smem:[#allocation0]]
  $region57: #{tpu_custom_call.1} parent=0
    _
  %s5 = ssub.s32 1, %s3
  %s6 = scalar_select 0, %s5, %s3
  $region1: #{tpu_custom_call.1} parent=0
    #allocation3 [shape = 'u8[8192]{0}', space=vmem, size = 0x2000, scoped, tag = 'input window, operand 0']
    #allocation4 [shape = 's32[2]{0}', space=sflag, size = 0x8, scoped, tag = 'scoped memory for tpu_custom_call.1']
    #allocation5 [shape = 'u8[2048]{0}', space=vmem, size = 0x800, scoped, tag = 'input window, operand 1']
    #allocation6 [shape = 's32[2]{0}', space=sflag, size = 0x8, scoped, tag = 'scoped memory for tpu_custom_call.1']
    %7 = vsyncpa [#allocation4], 0
    %s8 = scalar_lea.sflag [#allocation4], 1
    %9 = vsyncpa %s8, 0
    %10 = vsyncpa [#allocation6], 0
    %s11 = scalar_lea.sflag [#allocation6], 1
    %12 = vsyncpa %s11, 0
    loop: start=0, step=1, limit=4
    $region2: #{tpu_custom_call.1} parent=1 // loop_pre_header
      _
    $region3: #{tpu_custom_call.1} parent=1 // loop_header
      %s14 = sphi 0, %s18
      %p15 = scmp.ge.s32.totalorder %s14, 4
      %s21 = sphi 0, %s33
      %s22 = sphi 0, %s29
      %s23 = sphi 0, %s21
      %s24 = sphi 0, %s22
      %s25 = sphi 0, %s23
      %s26 = sphi 0, %s24
      %s38 = sphi 0, %s40
      %s41 = sphi 0, %s38
      %s42 = sphi 0, %s41
      %s58 = sphi 0, %s42
      %s66 = sphi 0, %s68
      %s69 = sphi 0, %s66
      %s70 = sphi 0, %s69
      %s86 = sphi 0, %s70
      %s92 = sphi 0, %s94
      %s95 = sphi 0, %s92
      %s96 = sphi 0, %s95
      %s112 = sphi 0, %s96
    $region4: #{tpu_custom_call.1} parent=1 // loop_header_branch
      %17 = sbr.rel (%p15) target = $region8
    $region5: #{tpu_custom_call.1} parent=1 // loop_body
      %s19 = ssub.s32 %s14, 1
      %s20 = ssub.s32 %s14, 2
      %s27 = sadd.s32 1, %s22
      %p28 = scmp.ge.s32.totalorder %s27, 1
      %s29 = scalar_select %p28, 0, %s27
      %s30 = sadd.s32 1, %s21
      %s31 = scalar_select %p28, %s30, %s21
      %p32 = scmp.ge.s32.totalorder %s31, 2
      %s33 = scalar_select %p32, 0, %s31
      %s34 = ssub.s32 %s21, %s33
      %s35 = ssub.s32 %s22, %s29
      %s36 = sor.u32 %s34, %s35
      %p37 = scmp.eq.s32.totalorder %s36, 0
      %s39 = sadd.s32 %s38, 1
      %s40 = scalar_select %p37, %s38, %s39
      %p43 = pneg %p37
      %p44 = scmp.eq.s32.totalorder %s14, 1
      %p45 = por %p43, %p44
      %p46 = scmp.ne.s32.totalorder %s38, %s41
      %p47 = scmp.eq.s32.totalorder %s14, 0
      %p48 = por %p46, %p47
      %p49 = scmp.ne.s32.totalorder %s38, %s41
      %p50 = scmp.eq.s32.totalorder %s19, 1
      %p51 = por %p49, %p50
      %p52 = scmp.ne.s32.totalorder %s41, %s42
      %p53 = scmp.eq.s32.totalorder %s19, 0
      %p54 = por %p52, %p53
      %p55 = scmp.ne.s32.totalorder %s41, %s42
      %p56 = scmp.eq.s32.totalorder %s20, 1
      %p57 = por %p55, %p56
      %p59 = scmp.ne.s32.totalorder %s42, %s58
      %p60 = scmp.eq.s32.totalorder %s20, 0
      %p61 = por %p59, %p60
      %s62 = ssub.s32 %s21, %s33
      %s63 = ssub.s32 %s22, %s29
      %s64 = sor.u32 %s62, %s63
      %p65 = scmp.eq.s32.totalorder %s64, 0
      %s67 = sadd.s32 %s66, 1
      %s68 = scalar_select %p65, %s66, %s67
      %p71 = pneg %p65
      %p72 = scmp.eq.s32.totalorder %s14, 1
      %p73 = por %p71, %p72
      %p74 = scmp.ne.s32.totalorder %s66, %s69
      %p75 = scmp.eq.s32.totalorder %s14, 0
      %p76 = por %p74, %p75
      %p77 = scmp.ne.s32.totalorder %s66, %s69
      %p78 = scmp.eq.s32.totalorder %s19, 1
      %p79 = por %p77, %p78
      %p80 = scmp.ne.s32.totalorder %s69, %s70
      %p81 = scmp.eq.s32.totalorder %s19, 0
      %p82 = por %p80, %p81
      %p83 = scmp.ne.s32.totalorder %s69, %s70
      %p84 = scmp.eq.s32.totalorder %s20, 1
      %p85 = por %p83, %p84
      %p87 = scmp.ne.s32.totalorder %s70, %s86
      %p88 = scmp.eq.s32.totalorder %s20, 0
      %p89 = por %p87, %p88
      %s90 = ssub.s32 %s21, %s33
      %p91 = scmp.eq.s32.totalorder %s90, 0
      %s93 = sadd.s32 %s92, 1
      %s94 = scalar_select %p91, %s92, %s93
      %p97 = pneg %p91
      %p98 = scmp.eq.s32.totalorder %s14, 1
      %p99 = por %p97, %p98
      %p100 = scmp.ne.s32.totalorder %s92, %s95
      %p101 = scmp.eq.s32.totalorder %s14, 0
      %p102 = por %p100, %p101
      %p103 = scmp.ne.s32.totalorder %s92, %s95
      %p104 = scmp.eq.s32.totalorder %s19, 1
      %p105 = por %p103, %p104
      %p106 = scmp.ne.s32.totalorder %s95, %s96
      %p107 = scmp.eq.s32.totalorder %s19, 0
      %p108 = por %p106, %p107
      %p109 = scmp.ne.s32.totalorder %s95, %s96
      %p110 = scmp.eq.s32.totalorder %s20, 1
      %p111 = por %p109, %p110
      %p113 = scmp.ne.s32.totalorder %s96, %s112
      %p114 = scmp.eq.s32.totalorder %s20, 0
      %p115 = por %p113, %p114
      %p116 = scmp.le.s32.totalorder 1, %s14
      %p117 = scmp.lt.s32.totalorder %s14, 3
      %p118 = pnand %p116, %p117
      %p119 = pneg %p118
      // Predicated region
      $region9: #{tpu_custom_call.1} parent=5 // pred_check
        _
      $region10: #{tpu_custom_call.1} parent=5 // pred_check_branch
        %121 = sbr.rel (%p118) target = $region12
      $region11: #{tpu_custom_call.1} parent=5 // pred_region
        %s122 = ssub.s32 %s14, 1
      $region12: #{tpu_custom_call.1} parent=5 // pred_fallthru
        _
      %p123 = scmp.lt.s32.totalorder %s14, 2
      // Predicated region
      $region13: #{tpu_custom_call.1} parent=5 // pred_check
        %p124 = pneg %p123
      $region14: #{tpu_custom_call.1} parent=5 // pred_check_branch
        %126 = sbr.rel (%p124) target = $region16
      $region15: #{tpu_custom_call.1} parent=5 // pred_region
        // Predicated region
        $region17: #{tpu_custom_call.1} parent=15 // pred_check
          %p127 = pneg %p48
        $region18: #{tpu_custom_call.1} parent=15 // pred_check_branch
          %129 = sbr.rel (%p127) target = $region20
        $region19: #{tpu_custom_call.1} parent=15 // pred_region
          %s130 = sand.u32 %s38, 1
          %s131 = scalar_lea.sflag [#allocation4], %s130
          %s132 = sand.u32 %s38, 1
          %s133 = smul.addr %s132, 8
          %s134 = scalar_lea.vmem [#allocation3], %s133
          %136 = vsyncadd %s131, 0
          %s137 = smul.addr %s21, 4
          %s138 = sadd.s32 %s22, %s137
          %s139 = smul.addr %s138, 2
          %s140 = scalar_lea.hbm %s0, %s139
          %s141 = sshll.u32 %s140, 4
          %s142 = int_to_ptr.hbm [resolvable:$true] %s141
          %s143 = sshll.u32 %s134, 4
          %s144 = int_to_ptr.vmem [resolvable:$true] %s143
          %149 = dma.hbm_to_vmem [thread:$0]  %s142, 128, %s144, %s131, 32, 32, 2
        $region20: #{tpu_custom_call.1} parent=15 // pred_fallthru
          _
        // Predicated region
        $region21: #{tpu_custom_call.1} parent=15 // pred_check
          %p150 = pneg %p76
        $region22: #{tpu_custom_call.1} parent=15 // pred_check_branch
          %152 = sbr.rel (%p150) target = $region24
        $region23: #{tpu_custom_call.1} parent=15 // pred_region
          %s153 = sand.u32 %s66, 1
          %s154 = scalar_lea.sflag [#allocation6], %s153
          %s155 = sand.u32 %s66, 1
          %s156 = smul.addr %s155, 2
          %s157 = scalar_lea.vmem [#allocation5], %s156
          %159 = vsyncadd %s154, 0
          %s160 = sadd.s32 %s22, %s21
          %s161 = smul.addr %s160, 2
          %s162 = scalar_lea.hbm %s1, %s161
          %s164 = sshll.u32 %s162, 4
          %s165 = int_to_ptr.hbm [resolvable:$true] %s164
          %s166 = sshll.u32 %s157, 4
          %s167 = int_to_ptr.vmem [resolvable:$true] %s166
          %169 = dma.hbm_to_vmem [thread:$0]  %s165, 32, %s167, %s154
        $region24: #{tpu_custom_call.1} parent=15 // pred_fallthru
          _
      $region16: #{tpu_custom_call.1} parent=5 // pred_fallthru
        _
      %p170 = scmp.le.s32.totalorder 1, %s14
      %p171 = scmp.lt.s32.totalorder %s14, 3
      %p172 = pnand %p170, %p171
      %p173 = pneg %p172
      // Predicated region
      $region25: #{tpu_custom_call.1} parent=5 // pred_check
        _
      $region26: #{tpu_custom_call.1} parent=5 // pred_check_branch
        %175 = sbr.rel (%p172) target = $region28
      $region27: #{tpu_custom_call.1} parent=5 // pred_region
        %s176 = ssub.s32 %s14, 1
        %s177 = sand.u32 %s41, 1
        %s178 = scalar_lea.sflag [#allocation4], %s177
        %s179 = sand.u32 %s41, 1
        %s180 = smul.addr %s179, 8
        %s181 = scalar_lea.vmem [#allocation3], %s180
        // Predicated region
        $region29: #{tpu_custom_call.1} parent=27 // pred_check
          %p182 = pneg %p54
        $region30: #{tpu_custom_call.1} parent=27 // pred_check_branch
          %184 = sbr.rel (%p182) target = $region32
        $region31: #{tpu_custom_call.1} parent=27 // pred_region
          %186 = dma.done %s178, 128
        $region32: #{tpu_custom_call.1} parent=27 // pred_fallthru
          _
        %s187 = sand.u32 %s69, 1
        %s188 = scalar_lea.sflag [#allocation6], %s187
        %s189 = sand.u32 %s69, 1
        %s190 = smul.addr %s189, 2
        %s191 = scalar_lea.vmem [#allocation5], %s190
        // Predicated region
        $region33: #{tpu_custom_call.1} parent=27 // pred_check
          %p192 = pneg %p82
        $region34: #{tpu_custom_call.1} parent=27 // pred_check_branch
          %194 = sbr.rel (%p192) target = $region36
        $region35: #{tpu_custom_call.1} parent=27 // pred_region
          %196 = dma.done %s188, 32
        $region36: #{tpu_custom_call.1} parent=27 // pred_fallthru
          _
        %s197 = sand.u32 %s41, 1
        %s198 = scalar_lea.sflag [#allocation4], %s197
        %s199 = sand.u32 %s41, 1
        %s200 = smul.addr %s199, 8
        %s201 = scalar_lea.vmem [#allocation3], %s200
        %p202 = pneg %p54
        %p203 = pneg %p51
        %s204 = sand.u32 %s69, 1
        %s205 = scalar_lea.sflag [#allocation6], %s204
        %s206 = sand.u32 %s69, 1
        %s207 = smul.addr %s206, 2
        %s208 = scalar_lea.vmem [#allocation5], %s207
        %p209 = pneg %p82
        %p210 = pneg %p79
        %p211 = pneg %p108
        %p212 = pneg %p105
        %p213 = scmp.lt.s32.totalorder %s23, 1
        %s214 = scalar_select %p213, %s23, 1
        %s215 = smul.addr %s214, 4
        %s216 = scalar_lea.vmem %s2, %s215
        %p217 = scmp.lt.s32.totalorder %s23, 1
        %s218 = scalar_select %p217, %s23, 1
        %s219 = smul.addr %s218, 4
        %s220 = scalar_lea.vmem %s2, %s219
        %p221 = scmp.eq.s32.totalorder %s24, 0
        // Predicated region
        $region37: #{tpu_custom_call.1} parent=27 // pred_check
          %p222 = pneg %p221
        $region38: #{tpu_custom_call.1} parent=27 // pred_check_branch
          %224 = sbr.rel (%p222) target = $region40
        $region39: #{tpu_custom_call.1} parent=27 // pred_region
          %225 = vst [vmem:[#allocation2] sm:$0xf] 0.0
          %226 = vst [vmem:[#allocation2 + $0x4] sm:$0xf] 0.0
          %227 = vst [vmem:[#allocation2 + $0x8] sm:$0xf] 0.0
        $region40: #{tpu_custom_call.1} parent=27 // pred_fallthru
          _
        %v228 = vld [vmem:[%s181] sm:$0x3]
        %v229 = vld [vmem:[%s181 + $0x2] sm:$0x3]
        %v230 = vld [vmem:[%s181 + $0x4] sm:$0x3]
        %v231 = vld [vmem:[%s181 + $0x6] sm:$0x3]
        %v232 = vld [vmem:[%s191] sm:$0x3]
        %vm233 = vcmp.eq.s32.totalorder %v232, 0
        %vm234 = vcmp.eq.s32.totalorder %v232, 1
        %vm235 = vcmp.eq.s32.totalorder %v232, 2
        %vm236 = vcmp.eq.s32.totalorder %v232, 3
        %v237 = vsel %vm233, 1, 0
        %v238 = vsel %vm234, 1, 0
        %v239 = vsel %vm235, 1, 0
        %v240 = vsel %vm236, 1, 0
        %v241 = vcvt.s32.f32 %v237
        %v242 = vcvt.s32.f32 %v238
        %v243 = vcvt.s32.f32 %v239
        %v244 = vcvt.s32.f32 %v240
        %v245 = vld [vmem:[#allocation2] sm:$0xf]
        %v246 = vmul.f32 %v228, %v241
        %v247 = vmul.f32 %v229, %v242
        %v248 = vmul.f32 %v230, %v243
        %v249 = vmul.f32 %v231, %v244
        %vm250 = vcmask 1041408
        %v251 = vsel %vm250, %v246, 0.0
        %v252 = vrot.slane %v251, 4
        %v253 = vadd.f32 %v251, %v252
        %v254 = vrot.slane %v253, 2
        %v255 = vadd.f32 %v253, %v254
        %v256 = vrot.slane %v255, 1
        %v257 = vadd.f32 %v255, %v256
        %v258 = vsel %vm250, %v247, 0.0
        %v259 = vrot.slane %v258, 4
        %v260 = vadd.f32 %v258, %v259
        %v261 = vrot.slane %v260, 2
        %v262 = vadd.f32 %v260, %v261
        %v263 = vrot.slane %v262, 1
        %v264 = vadd.f32 %v262, %v263
        %v265 = vsel %vm250, %v248, 0.0
        %v266 = vrot.slane %v265, 4
        %v267 = vadd.f32 %v265, %v266
        %v268 = vrot.slane %v267, 2
        %v269 = vadd.f32 %v267, %v268
        %v270 = vrot.slane %v269, 1
        %v271 = vadd.f32 %v269, %v270
        %v272 = vsel %vm250, %v249, 0.0
        %v273 = vrot.slane %v272, 4
        %v274 = vadd.f32 %v272, %v273
        %v275 = vrot.slane %v274, 2
        %v276 = vadd.f32 %v274, %v275
        %v277 = vrot.slane %v276, 1
        %v278 = vadd.f32 %v276, %v277
        %vm283 = vcmask 1041409
        %v284 = vsel %vm283, %v264, %v257
        %vm285 = vcmask 1042434
        %v286 = vsel %vm285, %v271, %v284
        %vm287 = vcmask 1043459
        %v288 = vsel %vm287, %v278, %v286
        %v290 = vadd.f32 %v245, %v288
        %291 = vst [vmem:[#allocation2] sm:$0xf] %v290
        %s292 = scalar_lea.vmem [#allocation2], 4
        %v293 = vld [vmem:[%s292] sm:$0xf]
        %v294 = vsel %vm250, %v241, 0.0
        %v295 = vrot.slane %v294, 4
        %v296 = vadd.f32 %v294, %v295
        %v297 = vrot.slane %v296, 2
        %v298 = vadd.f32 %v296, %v297
        %v299 = vrot.slane %v298, 1
        %v300 = vadd.f32 %v298, %v299
        %v301 = vsel %vm250, %v242, 0.0
        %v302 = vrot.slane %v301, 4
        %v303 = vadd.f32 %v301, %v302
        %v304 = vrot.slane %v303, 2
        %v305 = vadd.f32 %v303, %v304
        %v306 = vrot.slane %v305, 1
        %v307 = vadd.f32 %v305, %v306
        %v308 = vsel %vm250, %v243, 0.0
        %v309 = vrot.slane %v308, 4
        %v310 = vadd.f32 %v308, %v309
        %v311 = vrot.slane %v310, 2
        %v312 = vadd.f32 %v310, %v311
        %v313 = vrot.slane %v312, 1
        %v314 = vadd.f32 %v312, %v313
        %v315 = vsel %vm250, %v244, 0.0
        %v316 = vrot.slane %v315, 4
        %v317 = vadd.f32 %v315, %v316
        %v318 = vrot.slane %v317, 2
        %v319 = vadd.f32 %v317, %v318
        %v320 = vrot.slane %v319, 1
        %v321 = vadd.f32 %v319, %v320
        %v326 = vsel %vm283, %v307, %v300
        %v327 = vsel %vm285, %v314, %v326
        %v328 = vsel %vm287, %v321, %v327
        %v330 = vadd.f32 %v293, %v328
        %331 = vst [vmem:[%s292] sm:$0xf] %v330
        %s332 = scalar_lea.vmem [#allocation2], 8
        %v333 = vld [vmem:[%s332] sm:$0xf]
        %v334 = vmul.f32 %v228, %v228
        %v335 = vmul.f32 %v229, %v229
        %v336 = vmul.f32 %v230, %v230
        %v337 = vmul.f32 %v231, %v231
        %v338 = vsel %vm250, %v334, 0.0
        %v339 = vrot.slane %v338, 4
        %v340 = vadd.f32 %v338, %v339
        %v341 = vrot.slane %v340, 2
        %v342 = vadd.f32 %v340, %v341
        %v343 = vrot.slane %v342, 1
        %v344 = vadd.f32 %v342, %v343
        %v345 = vsel %vm250, %v335, 0.0
        %v346 = vrot.slane %v345, 4
        %v347 = vadd.f32 %v345, %v346
        %v348 = vrot.slane %v347, 2
        %v349 = vadd.f32 %v347, %v348
        %v350 = vrot.slane %v349, 1
        %v351 = vadd.f32 %v349, %v350
        %v352 = vsel %vm250, %v336, 0.0
        %v353 = vrot.slane %v352, 4
        %v354 = vadd.f32 %v352, %v353
        %v355 = vrot.slane %v354, 2
        %v356 = vadd.f32 %v354, %v355
        %v357 = vrot.slane %v356, 1
        %v358 = vadd.f32 %v356, %v357
        %v359 = vsel %vm250, %v337, 0.0
        %v360 = vrot.slane %v359, 4
        %v361 = vadd.f32 %v359, %v360
        %v362 = vrot.slane %v361, 2
        %v363 = vadd.f32 %v361, %v362
        %v364 = vrot.slane %v363, 1
        %v365 = vadd.f32 %v363, %v364
        %v370 = vsel %vm283, %v351, %v344
        %v371 = vsel %vm285, %v358, %v370
        %v372 = vsel %vm287, %v365, %v371
        %v374 = vadd.f32 %v333, %v372
        %375 = vst [vmem:[%s332] sm:$0xf] %v374
        // Predicated region
        $region41: #{tpu_custom_call.1} parent=27 // pred_check
          %p376 = pneg %p221
        $region42: #{tpu_custom_call.1} parent=27 // pred_check_branch
          %378 = sbr.rel (%p376) target = $region44
        $region43: #{tpu_custom_call.1} parent=27 // pred_region
          %v379 = vld [vmem:[#allocation2] sm:$0xf]
          %v380 = vld [vmem:[#allocation2 + $0x4] sm:$0xf]
          %v381 = vld [vmem:[#allocation2 + $0x8] sm:$0xf]
          %vm382 = vcmask 1043456
          %v383 = vsel %vm382, %v379, 0.0
          %384 = vadd.xlane.f32.xlu0 %v383
          %v385 = vpop.xlane.xlu0 %384
          %v386 = vsel %vm382, %v380, 0.0
          %387 = vadd.xlane.f32.xlu0 %v386
          %v388 = vpop.xlane.xlu0 %387
          %v389 = vsel %vm382, %v381, 0.0
          %390 = vadd.xlane.f32.xlu0 %v389
          %v391 = vpop.xlane.xlu0 %390
          %v395 = vlaneseq
          %v396 = vand.u32 %v395, 127
          %v397 = vperm.slane %v385, %v396
          %v398 = vperm.slane %v388, %v396
          %v399 = vperm.slane %v391, %v396
          %v400 = vsel %vm283, %v398, %v397
          %v401 = vsel %vm285, %v399, %v400
          %vm403 = vcmask 26624
          %404 = vst.msk [vmem:[%s220] sm:$0x7] %vm403, %v401
        $region44: #{tpu_custom_call.1} parent=27 // pred_fallthru
          _
        %p405 = scmp.lt.s32.totalorder %s23, 1
        %s406 = scalar_select %p405, %s23, 1
        %s407 = smul.addr %s406, 4
        %s408 = scalar_lea.vmem %s2, %s407
        // Predicated region
        $region45: #{tpu_custom_call.1} parent=27 // pred_check
          %p409 = pneg %p105
        $region46: #{tpu_custom_call.1} parent=27 // pred_check_branch
          %411 = sbr.rel (%p409) target = $region48
        $region47: #{tpu_custom_call.1} parent=27 // pred_region
          _
        $region48: #{tpu_custom_call.1} parent=27 // pred_fallthru
          _
      $region28: #{tpu_custom_call.1} parent=5 // pred_fallthru
        _
      %p412 = scmp.le.s32.totalorder 2, %s14
      // Predicated region
      $region49: #{tpu_custom_call.1} parent=5 // pred_check
        %p413 = pneg %p412
      $region50: #{tpu_custom_call.1} parent=5 // pred_check_branch
        %415 = sbr.rel (%p413) target = $region52
      $region51: #{tpu_custom_call.1} parent=5 // pred_region
        %s416 = ssub.s32 %s14, 2
        // Predicated region
        $region53: #{tpu_custom_call.1} parent=51 // pred_check
          %p417 = pneg %p111
        $region54: #{tpu_custom_call.1} parent=51 // pred_check_branch
          %419 = sbr.rel (%p417) target = $region56
        $region55: #{tpu_custom_call.1} parent=51 // pred_region
          %p420 = scmp.lt.s32.totalorder %s25, 1
          %s421 = scalar_select %p420, %s25, 1
          %s422 = smul.addr %s421, 4
          %s423 = scalar_lea.vmem %s2, %s422
        $region56: #{tpu_custom_call.1} parent=51 // pred_fallthru
          _
      $region52: #{tpu_custom_call.1} parent=5 // pred_fallthru
        _
    $region6: #{tpu_custom_call.1} parent=1 // loop_footer
      %s18 = sadd.s32 1, %s14
    $region7: #{tpu_custom_call.1} parent=1 // loop_footer_branch
      %13 = sbr.rel target = $region3
    $region8: #{tpu_custom_call.1} parent=1 // loop_exit
      _
    %424 = vsyncpa [#allocation4], 1
    %s425 = scalar_lea.sflag [#allocation4], 1
    %426 = vsyncpa %s425, 1
    %427 = vsyncpa [#allocation6], 1
    %s428 = scalar_lea.sflag [#allocation6], 1
    %429 = vsyncpa %s428, 1

</llo_original>
